<compile_context>
chip_gen: v7x
topology: tpu7x:2x2x1
jax: 0.10.0
libtpu: 0.0.40
codegen_flags: <defaults>
</compile_context>

<pallas_src>
import jax
import jax.numpy as jnp
from jax.experimental import pallas as pl
from jax.experimental.pallas import tpu as pltpu

_LANES = 128
_MAX_BLOCK_ROWS = 1024          # 1024 x 128 x 4 B = 512 KiB per operand block
_DROP_P = 0.7                   # dropout probability (keep prob = 0.3)
_KEEP_SCALE = 1.0 / (1.0 - _DROP_P)
_DROP_T24 = int(round(_DROP_P * (1 << 24)))   # keep iff 24-bit uniform >= this
_INV24 = 1.0 / (1 << 24)


def _mix_u32(v):
    """32-bit integer finalizer (splitmix/murmur style) — pure jnp, lowers on
    TPU Mosaic and in interpret mode alike."""
    v = v ^ (v >> 16)
    v = v * jnp.uint32(0x7FEB352D)
    v = v ^ (v >> 15)
    v = v * jnp.uint32(0x846CA68B)
    v = v ^ (v >> 16)
    return v


def _model_kernel(seed_ref, x_ref, y_ref, o_ref):
    shp = x_ref.shape                      # (block_rows, 128), static
    block_rows = shp[0]

    # Per-element global counter -> reproducible, tile-independent randomness.
    rid = jax.lax.broadcasted_iota(jnp.int32, shp, 0).astype(jnp.uint32)
    cid = jax.lax.broadcasted_iota(jnp.int32, shp, 1).astype(jnp.uint32)
    row0 = (pl.program_id(0) * block_rows).astype(jnp.uint32)
    gidx = (row0 + rid) * jnp.uint32(_LANES) + cid
    seed_mix = seed_ref[0].astype(jnp.uint32) * jnp.uint32(0x9E3779B9)
    base = gidx * jnp.uint32(4) + seed_mix          # 4 streams per element

    def u24(stream):
        # 24-bit uniform integer in [0, 2^24) for stream `stream`.
        bits = _mix_u32(base + jnp.uint32(stream))
        return (bits >> 8).astype(jnp.int32)

    def unif(stream):
        # float32 uniform in [0, 1).
        return u24(stream).astype(jnp.float32) * _INV24

    x = x_ref[...]
    y = y_ref[...]

    # v1 = dropout(x, p=0.7)  (training-mode dropout, scaled by 1/(1-p)).
    keep = u24(0) >= _DROP_T24
    v1 = jnp.where(keep, x * _KEEP_SCALE, jnp.zeros_like(x))

    # t1 = (v1 + y) + w1 ; z1 = silu(t1)
    t1 = (v1 + y) + unif(1)
    z1 = t1 * (1.0 / (1.0 + jnp.exp(-t1)))

    # z2 = (v1 + w2) + z1 + w3
    out = (v1 + unif(2)) + z1
    o_ref[...] = out + unif(3)


def model_forward(x, y, seed=0):
    """x, y: arrays of identical shape (NCHW in the PyTorch module)."""
    assert x.shape == y.shape
    orig_shape = x.shape
    n = x.size

    # Flatten to a lane-dense 2-D slab; pad only the tail (and only if needed).
    xf = jnp.asarray(x, jnp.float32).reshape(-1)
    yf = jnp.asarray(y, jnp.float32).reshape(-1)
    rem = (-n) % _LANES
    if rem:
        xf = jnp.pad(xf, (0, rem))
        yf = jnp.pad(yf, (0, rem))
    rows = (n + rem) // _LANES
    x2 = xf.reshape(rows, _LANES)
    y2 = yf.reshape(rows, _LANES)

    # Block: full array if small, otherwise 1024 rows (512 KiB / operand).
    block_rows = rows if rows <= _MAX_BLOCK_ROWS else _MAX_BLOCK_ROWS
    grid = (pl.cdiv(rows, block_rows),)

    seed_arr = jnp.array([seed], dtype=jnp.int32)

    out2 = pl.pallas_call(
        _model_kernel,
        out_shape=jax.ShapeDtypeStruct((rows, _LANES), jnp.float32),
        grid=grid,
        in_specs=[
            pl.BlockSpec(memory_space=pltpu.MemorySpace.SMEM),        # seed
            pl.BlockSpec((block_rows, _LANES), lambda i: (i, 0)),     # x block
            pl.BlockSpec((block_rows, _LANES), lambda i: (i, 0)),     # y block
        ],
        out_specs=pl.BlockSpec((block_rows, _LANES), lambda i: (i, 0)),
        compiler_params=pltpu.CompilerParams(
            dimension_semantics=("parallel",)),
        cost_estimate=pl.CostEstimate(
            flops=30 * n, transcendentals=n, bytes_accessed=3 * n * 4),
    )(seed_arr, x2, y2)

    out = out2.reshape(-1)
    if rem:
        out = out[:n]
    return out.reshape(orig_shape)


if __name__ == "__main__":
    key = jax.random.PRNGKey(0)
    kx, ky = jax.random.split(key)
    # Small NCHW inputs consistent with the module's elementwise forward.
    x = jax.random.normal(kx, (2, 4, 16, 16), dtype=jnp.float32)
    y = jax.random.normal(ky, (2, 4, 16, 16), dtype=jnp.float32)

    out = model_forward(x, y, seed=0)
    jax.block_until_ready(out)
    assert out.shape == x.shape and out.dtype == jnp.float32
    assert bool(jnp.all(jnp.isfinite(out)))
    print("KERNEL_OK")
</pallas_src>

<mosaic_0001>
module attributes {stable_mosaic.version = 11 : i64} {
  func.func @_model_kernel(%arg0: i32, %arg1: memref<1xi32, #tpu.memory_space<smem>>, %arg2: memref<16x128xf32, #tpu.memory_space<vmem>>, %arg3: memref<16x128xf32, #tpu.memory_space<vmem>>, %arg4: memref<16x128xf32, #tpu.memory_space<vmem>>) attributes {dimension_semantics = [#tpu.dimension_semantics<parallel>], iteration_bounds = array<i64: 1>, scalar_prefetch = 0 : i64, scratch_operands = 0 : i64, tpu.core_type = #tpu.core_type<tc>, window_params = [{transform_indices = @transform_0, window_bounds = array<i64: 1>}, {transform_indices = @transform_1, window_bounds = array<i64: 16, 128>}, {transform_indices = @transform_2, window_bounds = array<i64: 16, 128>}, {transform_indices = @transform_3, window_bounds = array<i64: 16, 128>}]} {
    %0 = tpu.iota {dimensions = array<i32: 0>} : vector<16x128xi32>
    %1 = tpu.iota {dimensions = array<i32: 1>} : vector<16x128xi32>
    %c16_i32 = arith.constant 16 : i32
    %2 = arith.muli %arg0, %c16_i32 : i32
    %3 = vector.broadcast %2 : i32 to vector<16x128xi32>
    %4 = arith.addi %3, %0 : vector<16x128xi32>
    %c128_i32 = arith.constant 128 : i32
    %5 = vector.broadcast %c128_i32 : i32 to vector<16x128xi32>
    %6 = arith.muli %4, %5 : vector<16x128xi32>
    %7 = arith.addi %6, %1 : vector<16x128xi32>
    %c0 = arith.constant 0 : index
    %8 = memref.load %arg1[%c0] : memref<1xi32, #tpu.memory_space<smem>>
    %c-1640531527_i32 = arith.constant -1640531527 : i32
    %9 = arith.muli %8, %c-1640531527_i32 : i32
    %c4_i32 = arith.constant 4 : i32
    %10 = vector.broadcast %c4_i32 : i32 to vector<16x128xi32>
    %11 = arith.muli %7, %10 : vector<16x128xi32>
    %12 = vector.broadcast %9 : i32 to vector<16x128xi32>
    %13 = arith.addi %11, %12 : vector<16x128xi32>
    %c0_0 = arith.constant 0 : index
    %c0_1 = arith.constant 0 : index
    %14 = vector.load %arg2[%c0_0, %c0_1] : memref<16x128xf32, #tpu.memory_space<vmem>>, vector<16x128xf32>
    %c0_2 = arith.constant 0 : index
    %c0_3 = arith.constant 0 : index
    %15 = vector.load %arg3[%c0_2, %c0_3] : memref<16x128xf32, #tpu.memory_space<vmem>>, vector<16x128xf32>
    %c0_i32 = arith.constant 0 : i32
    %16 = vector.broadcast %c0_i32 : i32 to vector<16x128xi32>
    %17 = arith.addi %13, %16 : vector<16x128xi32>
    %c16_i32_4 = arith.constant 16 : i32
    %18 = vector.broadcast %c16_i32_4 : i32 to vector<16x128xi32>
    %19 = arith.shrui %17, %18 : vector<16x128xi32>
    %20 = arith.xori %17, %19 : vector<16x128xi32>
    %c2146121005_i32 = arith.constant 2146121005 : i32
    %21 = vector.broadcast %c2146121005_i32 : i32 to vector<16x128xi32>
    %22 = arith.muli %20, %21 : vector<16x128xi32>
    %c15_i32 = arith.constant 15 : i32
    %23 = vector.broadcast %c15_i32 : i32 to vector<16x128xi32>
    %24 = arith.shrui %22, %23 : vector<16x128xi32>
    %25 = arith.xori %22, %24 : vector<16x128xi32>
    %c-2073254261_i32 = arith.constant -2073254261 : i32
    %26 = vector.broadcast %c-2073254261_i32 : i32 to vector<16x128xi32>
    %27 = arith.muli %25, %26 : vector<16x128xi32>
    %c16_i32_5 = arith.constant 16 : i32
    %28 = vector.broadcast %c16_i32_5 : i32 to vector<16x128xi32>
    %29 = arith.shrui %27, %28 : vector<16x128xi32>
    %30 = arith.xori %27, %29 : vector<16x128xi32>
    %c8_i32 = arith.constant 8 : i32
    %31 = vector.broadcast %c8_i32 : i32 to vector<16x128xi32>
    %32 = arith.shrui %30, %31 : vector<16x128xi32>
    %c11744051_i32 = arith.constant 11744051 : i32
    %33 = vector.broadcast %c11744051_i32 : i32 to vector<16x128xi32>
    %34 = arith.cmpi sge, %32, %33 : vector<16x128xi32>
    %cst = arith.constant 3.33333325 : f32
    %35 = vector.broadcast %cst : f32 to vector<16x128xf32>
    %36 = arith.mulf %14, %35 : vector<16x128xf32>
    %cst_6 = arith.constant 0.000000e+00 : f32
    %37 = vector.broadcast %cst_6 : f32 to vector<16x128xf32>
    %38 = arith.select %34, %36, %37 : vector<16x128xi1>, vector<16x128xf32>
    %39 = arith.addf %38, %15 : vector<16x128xf32>
    %c1_i32 = arith.constant 1 : i32
    %40 = vector.broadcast %c1_i32 : i32 to vector<16x128xi32>
    %41 = arith.addi %13, %40 : vector<16x128xi32>
    %c16_i32_7 = arith.constant 16 : i32
    %42 = vector.broadcast %c16_i32_7 : i32 to vector<16x128xi32>
    %43 = arith.shrui %41, %42 : vector<16x128xi32>
    %44 = arith.xori %41, %43 : vector<16x128xi32>
    %c2146121005_i32_8 = arith.constant 2146121005 : i32
    %45 = vector.broadcast %c2146121005_i32_8 : i32 to vector<16x128xi32>
    %46 = arith.muli %44, %45 : vector<16x128xi32>
    %c15_i32_9 = arith.constant 15 : i32
    %47 = vector.broadcast %c15_i32_9 : i32 to vector<16x128xi32>
    %48 = arith.shrui %46, %47 : vector<16x128xi32>
    %49 = arith.xori %46, %48 : vector<16x128xi32>
    %c-2073254261_i32_10 = arith.constant -2073254261 : i32
    %50 = vector.broadcast %c-2073254261_i32_10 : i32 to vector<16x128xi32>
    %51 = arith.muli %49, %50 : vector<16x128xi32>
    %c16_i32_11 = arith.constant 16 : i32
    %52 = vector.broadcast %c16_i32_11 : i32 to vector<16x128xi32>
    %53 = arith.shrui %51, %52 : vector<16x128xi32>
    %54 = arith.xori %51, %53 : vector<16x128xi32>
    %c8_i32_12 = arith.constant 8 : i32
    %55 = vector.broadcast %c8_i32_12 : i32 to vector<16x128xi32>
    %56 = arith.shrui %54, %55 : vector<16x128xi32>
    %57 = arith.sitofp %56 : vector<16x128xi32> to vector<16x128xf32>
    %cst_13 = arith.constant 5.96046448E-8 : f32
    %58 = vector.broadcast %cst_13 : f32 to vector<16x128xf32>
    %59 = arith.mulf %57, %58 : vector<16x128xf32>
    %60 = arith.addf %39, %59 : vector<16x128xf32>
    %cst_14 = arith.constant 0.000000e+00 : f32
    %61 = vector.broadcast %cst_14 : f32 to vector<16x128xf32>
    %62 = arith.subf %61, %60 : vector<16x128xf32>
    %63 = math.exp %62 : vector<16x128xf32>
    %cst_15 = arith.constant 1.000000e+00 : f32
    %64 = vector.broadcast %cst_15 : f32 to vector<16x128xf32>
    %65 = arith.addf %64, %63 : vector<16x128xf32>
    %cst_16 = arith.constant 1.000000e+00 : f32
    %66 = vector.broadcast %cst_16 : f32 to vector<16x128xf32>
    %67 = arith.divf %66, %65 : vector<16x128xf32>
    %68 = arith.mulf %60, %67 : vector<16x128xf32>
    %c2_i32 = arith.constant 2 : i32
    %69 = vector.broadcast %c2_i32 : i32 to vector<16x128xi32>
    %70 = arith.addi %13, %69 : vector<16x128xi32>
    %c16_i32_17 = arith.constant 16 : i32
    %71 = vector.broadcast %c16_i32_17 : i32 to vector<16x128xi32>
    %72 = arith.shrui %70, %71 : vector<16x128xi32>
    %73 = arith.xori %70, %72 : vector<16x128xi32>
    %c2146121005_i32_18 = arith.constant 2146121005 : i32
    %74 = vector.broadcast %c2146121005_i32_18 : i32 to vector<16x128xi32>
    %75 = arith.muli %73, %74 : vector<16x128xi32>
    %c15_i32_19 = arith.constant 15 : i32
    %76 = vector.broadcast %c15_i32_19 : i32 to vector<16x128xi32>
    %77 = arith.shrui %75, %76 : vector<16x128xi32>
    %78 = arith.xori %75, %77 : vector<16x128xi32>
    %c-2073254261_i32_20 = arith.constant -2073254261 : i32
    %79 = vector.broadcast %c-2073254261_i32_20 : i32 to vector<16x128xi32>
    %80 = arith.muli %78, %79 : vector<16x128xi32>
    %c16_i32_21 = arith.constant 16 : i32
    %81 = vector.broadcast %c16_i32_21 : i32 to vector<16x128xi32>
    %82 = arith.shrui %80, %81 : vector<16x128xi32>
    %83 = arith.xori %80, %82 : vector<16x128xi32>
    %c8_i32_22 = arith.constant 8 : i32
    %84 = vector.broadcast %c8_i32_22 : i32 to vector<16x128xi32>
    %85 = arith.shrui %83, %84 : vector<16x128xi32>
    %86 = arith.sitofp %85 : vector<16x128xi32> to vector<16x128xf32>
    %cst_23 = arith.constant 5.96046448E-8 : f32
    %87 = vector.broadcast %cst_23 : f32 to vector<16x128xf32>
    %88 = arith.mulf %86, %87 : vector<16x128xf32>
    %89 = arith.addf %38, %88 : vector<16x128xf32>
    %90 = arith.addf %89, %68 : vector<16x128xf32>
    %c3_i32 = arith.constant 3 : i32
    %91 = vector.broadcast %c3_i32 : i32 to vector<16x128xi32>
    %92 = arith.addi %13, %91 : vector<16x128xi32>
    %c16_i32_24 = arith.constant 16 : i32
    %93 = vector.broadcast %c16_i32_24 : i32 to vector<16x128xi32>
    %94 = arith.shrui %92, %93 : vector<16x128xi32>
    %95 = arith.xori %92, %94 : vector<16x128xi32>
    %c2146121005_i32_25 = arith.constant 2146121005 : i32
    %96 = vector.broadcast %c2146121005_i32_25 : i32 to vector<16x128xi32>
    %97 = arith.muli %95, %96 : vector<16x128xi32>
    %c15_i32_26 = arith.constant 15 : i32
    %98 = vector.broadcast %c15_i32_26 : i32 to vector<16x128xi32>
    %99 = arith.shrui %97, %98 : vector<16x128xi32>
    %100 = arith.xori %97, %99 : vector<16x128xi32>
    %c-2073254261_i32_27 = arith.constant -2073254261 : i32
    %101 = vector.broadcast %c-2073254261_i32_27 : i32 to vector<16x128xi32>
    %102 = arith.muli %100, %101 : vector<16x128xi32>
    %c16_i32_28 = arith.constant 16 : i32
    %103 = vector.broadcast %c16_i32_28 : i32 to vector<16x128xi32>
    %104 = arith.shrui %102, %103 : vector<16x128xi32>
    %105 = arith.xori %102, %104 : vector<16x128xi32>
    %c8_i32_29 = arith.constant 8 : i32
    %106 = vector.broadcast %c8_i32_29 : i32 to vector<16x128xi32>
    %107 = arith.shrui %105, %106 : vector<16x128xi32>
    %108 = arith.sitofp %107 : vector<16x128xi32> to vector<16x128xf32>
    %cst_30 = arith.constant 5.96046448E-8 : f32
    %109 = vector.broadcast %cst_30 : f32 to vector<16x128xf32>
    %110 = arith.mulf %108, %109 : vector<16x128xf32>
    %111 = arith.addf %90, %110 : vector<16x128xf32>
    %c0_31 = arith.constant 0 : index
    %c0_32 = arith.constant 0 : index
    %112 = vector.load %arg4[%c0_31, %c0_32] : memref<16x128xf32, #tpu.memory_space<vmem>>, vector<16x128xf32>
    tpu.vector_store %arg4[%c0_31, %c0_32], %111 {strides = array<i32>} : memref<16x128xf32, #tpu.memory_space<vmem>>, vector<16x128xf32>,
    return
  }
  func.func @transform_0(%arg0: i32) -> i32 {
    %c0_i32 = arith.constant 0 : i32
    %c0_i32_0 = arith.constant 0 : i32
    return %c0_i32 : i32
  }
  func.func @transform_1(%arg0: i32) -> (i32, i32) {
    %c0_i32 = arith.constant 0 : i32
    %c0_i32_0 = arith.constant 0 : i32
    return %arg0, %c0_i32 : i32, i32
  }
  func.func @transform_2(%arg0: i32) -> (i32, i32) {
    %c0_i32 = arith.constant 0 : i32
    %c0_i32_0 = arith.constant 0 : i32
    return %arg0, %c0_i32 : i32, i32
  }
  func.func @transform_3(%arg0: i32) -> (i32, i32) {
    %c0_i32 = arith.constant 0 : i32
    %c0_i32_0 = arith.constant 0 : i32
    return %arg0, %c0_i32 : i32, i32
  }
}

</mosaic_0001>

<llo_original>
// kernel: tpu_custom_call.1
$region0: #{tpu_custom_call.1}
  #allocation0 [shape = 'u32[]', space=smem, size = 0x4, offset = 0x4, fixed_abs, tag = 'smem constant byte address 0x4 - core index']
  #allocation1 [shape = 'u32[144,128]{1,0:T(1,128)}', space=vmem, size = 0x12000, scoped, tag = 'internal scratch']
  #allocation2 [shape = 's32[1]{0:T(128)S(6)}', space=smem, size = 0x200, scoped, tag = 'scoped memory for tpu_custom_call.1']
  %s0 = inlined_call_operand.<no memory space> [shape: s32[1], index: 0, kind: input, shape index: {}]
  %s1 = inlined_call_operand.hbm [shape: f32[16,128], index: 1, kind: input, shape index: {}]
  %s2 = inlined_call_operand.hbm [shape: f32[16,128], index: 2, kind: input, shape index: {}]
  %s3 = inlined_call_operand.hbm [shape: f32[16,128], index: 3, kind: output, shape index: {}]
  %s4 = sld [smem:[#allocation0]]
  $region30: #{tpu_custom_call.1} parent=0
    _
  %s6 = ssub.s32 1, %s4
  %s7 = scalar_select 0, %s6, %s4
  %8 = sst [smem:[#allocation2]] %s0
  $region1: #{tpu_custom_call.1} parent=0
    #allocation3 [shape = 'u8[8192]{0}', space=vmem, size = 0x2000, scoped, tag = 'input window, operand 1, single buffered']
    #allocation4 [shape = 's32[1]{0}', space=sflag, size = 0x4, scoped, tag = 'scoped memory for tpu_custom_call.1']
    #allocation5 [shape = 's32[1]{0}', space=sflag, size = 0x4, scoped, tag = 'scoped memory for tpu_custom_call.1']
    #allocation6 [shape = 'u8[8192]{0}', space=vmem, size = 0x2000, scoped, tag = 'input window, operand 2, single buffered']
    #allocation7 [shape = 's32[1]{0}', space=sflag, size = 0x4, scoped, tag = 'scoped memory for tpu_custom_call.1']
    #allocation8 [shape = 'u8[8192]{0}', space=vmem, size = 0x2000, scoped, tag = 'output window, operand 0, single buffered']
    %9 = vsyncpa [#allocation4], 0
    %10 = vsyncpa [#allocation7], 0
    %11 = vsyncpa [#allocation5], 0
    // Predicated region
    $region2: #{tpu_custom_call.1} parent=1 // pred_check
      _
    $region3: #{tpu_custom_call.1} parent=1 // pred_check_branch
      %13 = sbr.rel (0) target = $region5
    $region4: #{tpu_custom_call.1} parent=1 // pred_region
      _
    $region5: #{tpu_custom_call.1} parent=1 // pred_fallthru
      _
    // Predicated region
    $region6: #{tpu_custom_call.1} parent=1 // pred_check
      _
    $region7: #{tpu_custom_call.1} parent=1 // pred_check_branch
      %15 = sbr.rel (0) target = $region9
    $region8: #{tpu_custom_call.1} parent=1 // pred_region
      %s17 = ssub.s32 256, 256
      %18 = vsyncadd [#allocation4], %s17
      %s19 = sshll.u32 [#allocation3], 4
      %s20 = int_to_ptr.vmem [resolvable:$true] %s19
      %25 = dma.hbm_to_vmem [thread:$0]  %s1, 256, %s20, [#allocation4], 128, 128, 8
    $region9: #{tpu_custom_call.1} parent=1 // pred_fallthru
      _
    // Predicated region
    $region10: #{tpu_custom_call.1} parent=1 // pred_check
      _
    $region11: #{tpu_custom_call.1} parent=1 // pred_check_branch
      %27 = sbr.rel (0) target = $region13
    $region12: #{tpu_custom_call.1} parent=1 // pred_region
      %s29 = ssub.s32 256, 256
      %30 = vsyncadd [#allocation7], %s29
      %s31 = sshll.u32 [#allocation6], 4
      %s32 = int_to_ptr.vmem [resolvable:$true] %s31
      %37 = dma.hbm_to_vmem [thread:$0]  %s2, 256, %s32, [#allocation7], 128, 128, 8
    $region13: #{tpu_custom_call.1} parent=1 // pred_fallthru
      _
    // Predicated region
    $region14: #{tpu_custom_call.1} parent=1 // pred_check
      _
    $region15: #{tpu_custom_call.1} parent=1 // pred_check_branch
      %39 = sbr.rel (0) target = $region17
    $region16: #{tpu_custom_call.1} parent=1 // pred_region
      %40 = dma.done [#allocation4], 256
    $region17: #{tpu_custom_call.1} parent=1 // pred_fallthru
      _
    // Predicated region
    $region18: #{tpu_custom_call.1} parent=1 // pred_check
      _
    $region19: #{tpu_custom_call.1} parent=1 // pred_check_branch
      %42 = sbr.rel (0) target = $region21
    $region20: #{tpu_custom_call.1} parent=1 // pred_region
      %43 = dma.done [#allocation7], 256
    $region21: #{tpu_custom_call.1} parent=1 // pred_fallthru
      _
    %v44 = vlaneseq
    %v45 = vshrl.u32 %v44, 7
    %v46 = vadd.s32 %v45, 8
    %v47 = vlaneseq
    %v48 = vand.u32 %v47, 127
    %s49 = smul.u32 0, 16
    %v50 = vstv %s49
    %v51 = vadd.s32 %v50, %v45
    %v52 = vadd.s32 %v50, %v46
    %v53 = vmul.u32 %v51, 128
    %v54 = vmul.u32 %v52, 128
    %v55 = vadd.s32 %v53, %v48
    %v56 = vadd.s32 %v54, %v48
    %s57 = sld [smem:[#allocation2]]
    %s58 = smul.u32 %s57, 2654435769
    %v59 = vmul.u32 %v55, 4
    %v60 = vmul.u32 %v56, 4
    %v61 = vstv %s58
    %v62 = vadd.s32 %v59, %v61
    %v63 = vadd.s32 %v60, %v61
    %v64 = vld [vmem:[#allocation3] sm:$0xff]
    %v65 = vld [vmem:[#allocation3 + $0x8] sm:$0xff]
    %v66 = vld [vmem:[#allocation6] sm:$0xff]
    %v67 = vld [vmem:[#allocation6 + $0x8] sm:$0xff]
    %v68 = vshrl.u32 %v62, 16
    %v69 = vshrl.u32 %v63, 16
    %v70 = vxor.u32 %v62, %v68
    %v71 = vxor.u32 %v63, %v69
    %v72 = vmul.u32 %v70, 2146121005
    %v73 = vmul.u32 %v71, 2146121005
    %v74 = vshrl.u32 %v72, 15
    %v75 = vshrl.u32 %v73, 15
    %v76 = vxor.u32 %v72, %v74
    %v77 = vxor.u32 %v73, %v75
    %v78 = vmul.u32 %v76, 2221713035
    %v79 = vmul.u32 %v77, 2221713035
    %v80 = vshrl.u32 %v78, 16
    %v81 = vshrl.u32 %v79, 16
    %v82 = vxor.u32 %v78, %v80
    %v83 = vxor.u32 %v79, %v81
    %v84 = vshrl.u32 %v82, 8
    %v85 = vshrl.u32 %v83, 8
    %vm86 = vcmp.ge.s32.totalorder %v84, 11744051
    %vm87 = vcmp.ge.s32.totalorder %v85, 11744051
    %v88 = vmul.f32 %v64, 3.3333333
    %v89 = vmul.f32 %v65, 3.3333333
    %v90 = vsel %vm86, %v88, 0.0
    %v91 = vsel %vm87, %v89, 0.0
    %v92 = vadd.f32 %v90, %v66
    %v93 = vadd.f32 %v91, %v67
    %v94 = vadd.s32 %v62, 1
    %v95 = vadd.s32 %v63, 1
    %v96 = vshrl.u32 %v94, 16
    %v97 = vshrl.u32 %v95, 16
    %v98 = vxor.u32 %v94, %v96
    %v99 = vxor.u32 %v95, %v97
    %v100 = vmul.u32 %v98, 2146121005
    %v101 = vmul.u32 %v99, 2146121005
    %v102 = vshrl.u32 %v100, 15
    %v103 = vshrl.u32 %v101, 15
    %v104 = vxor.u32 %v100, %v102
    %v105 = vxor.u32 %v101, %v103
    %v106 = vmul.u32 %v104, 2221713035
    %v107 = vmul.u32 %v105, 2221713035
    %v108 = vshrl.u32 %v106, 16
    %v109 = vshrl.u32 %v107, 16
    %v110 = vxor.u32 %v106, %v108
    %v111 = vxor.u32 %v107, %v109
    %v112 = vshrl.u32 %v110, 8
    %v113 = vshrl.u32 %v111, 8
    %v114 = vcvt.s32.f32 %v112
    %v115 = vcvt.s32.f32 %v113
    %v116 = vmul.f32 %v114, 5.9604645e-08
    %v117 = vmul.f32 %v115, 5.9604645e-08
    %v118 = vadd.f32 %v92, %v116
    %v119 = vadd.f32 %v93, %v117
    %v120 = vsub.f32 0.0, %v118
    %v121 = vsub.f32 0.0, %v119
    %v122 = vmul.f32 %v120, 1.442695
    %v123 = vpow.pop %v122
    %v124 = vmul.f32 %v121, 1.442695
    %v125 = vpow.pop %v124
    %v126 = vadd.f32 %v123, 1.0
    %v127 = vadd.f32 %v125, 1.0
    %v128 = vrcp.pop %v126
    %v129 = vmul.f32 1.0, %v128
    %v130 = vrcp.pop %v127
    %v131 = vmul.f32 1.0, %v130
    %v132 = vmul.f32 %v118, %v129
    %v133 = vmul.f32 %v119, %v131
    %v134 = vadd.s32 %v62, 2
    %v135 = vadd.s32 %v63, 2
    %v136 = vshrl.u32 %v134, 16
    %v137 = vshrl.u32 %v135, 16
    %v138 = vxor.u32 %v134, %v136
    %v139 = vxor.u32 %v135, %v137
    %v140 = vmul.u32 %v138, 2146121005
    %v141 = vmul.u32 %v139, 2146121005
    %v142 = vshrl.u32 %v140, 15
    %v143 = vshrl.u32 %v141, 15
    %v144 = vxor.u32 %v140, %v142
    %v145 = vxor.u32 %v141, %v143
    %v146 = vmul.u32 %v144, 2221713035
    %v147 = vmul.u32 %v145, 2221713035
    %v148 = vshrl.u32 %v146, 16
    %v149 = vshrl.u32 %v147, 16
    %v150 = vxor.u32 %v146, %v148
    %v151 = vxor.u32 %v147, %v149
    %v152 = vshrl.u32 %v150, 8
    %v153 = vshrl.u32 %v151, 8
    %v154 = vcvt.s32.f32 %v152
    %v155 = vcvt.s32.f32 %v153
    %v156 = vmul.f32 %v154, 5.9604645e-08
    %v157 = vmul.f32 %v155, 5.9604645e-08
    %v158 = vadd.f32 %v90, %v156
    %v159 = vadd.f32 %v91, %v157
    %v160 = vadd.f32 %v158, %v132
    %v161 = vadd.f32 %v159, %v133
    %v162 = vadd.s32 %v62, 3
    %v163 = vadd.s32 %v63, 3
    %v164 = vshrl.u32 %v162, 16
    %v165 = vshrl.u32 %v163, 16
    %v166 = vxor.u32 %v162, %v164
    %v167 = vxor.u32 %v163, %v165
    %v168 = vmul.u32 %v166, 2146121005
    %v169 = vmul.u32 %v167, 2146121005
    %v170 = vshrl.u32 %v168, 15
    %v171 = vshrl.u32 %v169, 15
    %v172 = vxor.u32 %v168, %v170
    %v173 = vxor.u32 %v169, %v171
    %v174 = vmul.u32 %v172, 2221713035
    %v175 = vmul.u32 %v173, 2221713035
    %v176 = vshrl.u32 %v174, 16
    %v177 = vshrl.u32 %v175, 16
    %v178 = vxor.u32 %v174, %v176
    %v179 = vxor.u32 %v175, %v177
    %v180 = vshrl.u32 %v178, 8
    %v181 = vshrl.u32 %v179, 8
    %v182 = vcvt.s32.f32 %v180
    %v183 = vcvt.s32.f32 %v181
    %v184 = vmul.f32 %v182, 5.9604645e-08
    %v185 = vmul.f32 %v183, 5.9604645e-08
    %v186 = vadd.f32 %v160, %v184
    %v187 = vadd.f32 %v161, %v185
    %188 = vst [vmem:[#allocation8] sm:$0xff] %v186
    %189 = vst [vmem:[#allocation8 + $0x8] sm:$0xff] %v187
    // Predicated region
    $region22: #{tpu_custom_call.1} parent=1 // pred_check
      _
    $region23: #{tpu_custom_call.1} parent=1 // pred_check_branch
      %191 = sbr.rel (0) target = $region25
    $region24: #{tpu_custom_call.1} parent=1 // pred_region
      %s193 = ssub.s32 256, 256
      %194 = vsyncadd [#allocation5], %s193
      %s195 = sshll.u32 [#allocation8], 4
      %s196 = int_to_ptr.vmem [resolvable:$true] %s195
      %201 = dma.vmem_to_hbm [thread:$0]  %s196, 256, %s3, [#allocation5], 128, 128, 8
    $region25: #{tpu_custom_call.1} parent=1 // pred_fallthru
      _
    // Predicated region
    $region26: #{tpu_custom_call.1} parent=1 // pred_check
      _
    $region27: #{tpu_custom_call.1} parent=1 // pred_check_branch
      %203 = sbr.rel (0) target = $region29
    $region28: #{tpu_custom_call.1} parent=1 // pred_region
      %204 = dma.done [#allocation5], 256
    $region29: #{tpu_custom_call.1} parent=1 // pred_fallthru
      _
    %205 = vsyncpa [#allocation4], 1
    %206 = vsyncpa [#allocation7], 1
    %207 = vsyncpa [#allocation5], 1

</llo_original>
